<compile_context>
chip_gen: v7x
topology: tpu7x:2x2x1
jax: 0.10.0
libtpu: 0.0.40
codegen_flags: <defaults>
</compile_context>

<pallas_src>
import math

import jax
import jax.numpy as jnp
from jax.experimental import pallas as pl
from jax.experimental.pallas import tpu as pltpu


def attention_kernel(dec_ref, enc_ref, mask_ref, wd_ref, we_ref, b_ref, v_ref, out_ref):
    # dec_ref : [TB, D]      bf16  decoder hidden (batch tile)
    # enc_ref : [S, TB, E2]  bf16  encoder outputs, native seq-major layout
    # mask_ref: [TB, S]      int32 (0 = padding)
    # wd_ref  : [D,  A]      bf16  attn_W columns applied to decoder hidden
    # we_ref  : [E2, A]      bf16  attn_W columns applied to encoder outputs
    # b_ref   : [1,  A]      f32   attn_W bias      (A zero-padded to mult of 128)
    # v_ref   : [1,  A]      f32   attn_v weight    (zero in padded columns)
    # out_ref : [TB, S]      f32   softmax attention weights
    enc = enc_ref[...]
    S, TB, E2 = enc.shape
    A = wd_ref.shape[1]

    # Two MXU matmuls (bf16 inputs, f32 accumulation).  Splitting W into
    # (wd, we) is mathematically identical to cat(dec, enc) @ W.
    dec_proj = jnp.dot(dec_ref[...], wd_ref[...],
                       preferred_element_type=jnp.float32)               # [TB, A]
    enc_proj = jnp.dot(enc.reshape(S * TB, E2), we_ref[...],
                       preferred_element_type=jnp.float32)               # [S*TB, A]

    # f32 tanh (safe on all generations; v5e has no bf16 EUP path).
    energy = jnp.tanh(enc_proj.reshape(S, TB, A)
                      + dec_proj[None, :, :]
                      + b_ref[...].reshape(1, 1, A))                     # [S, TB, A]

    # attn_v: contract the lane axis A; padded columns are inert (v == 0 there).
    # (If VPU/XLU ever binds, this can move to the MXU as a [S*TB, A] @ [A, 1].)
    scores_sb = jnp.sum(energy * v_ref[...].reshape(1, 1, A), axis=-1)   # [S, TB]

    # Only the tiny score tile is transposed (XLU), never the big enc tensor.
    scores = scores_sb.T                                                 # [TB, S]
    scores = jnp.where(mask_ref[...] == 0, jnp.float32(-1.0e10), scores)

    # Numerically stable softmax over src_len; divide moved to the EUP
    # (approx reciprocal: rows normalize to ~1e-3/1e-4 relative accuracy).
    m = jnp.max(scores, axis=1, keepdims=True)
    e = jnp.exp(scores - m)
    denom = jnp.sum(e, axis=1, keepdims=True)
    out_ref[...] = (e * pl.reciprocal(denom, approx=True)).astype(out_ref.dtype)


def _round_up(x, m):
    return (x + m - 1) // m * m


def _vmem_limit_bytes():
    """Generation-aware scoped-VMEM limit.

    ~96 MiB on 128-MiB-VMEM parts (v5e/v6e), ~44 MiB on 64-MiB-per-TC parts
    (v7x).  Falls back to the conservative 44 MiB (safe everywhere) if the
    chip cannot be queried at trace time.
    """
    phys = None
    try:
        info = pltpu.get_tpu_info()
        phys = getattr(info, "vmem_capacity_bytes", None)
    except Exception:
        phys = None
    if phys is not None and int(phys) >= 100 * 1024 * 1024:
        return 96 * 1024 * 1024
    return 44 * 1024 * 1024


def _pick_block_b(B, S, D, E2, A_pad, budget_bytes):
    """Largest batch tile TB that divides B and fits the VMEM budget.

    Footprint accounting (per review):
      * enc tile lane-padded to round_up(E2, 128), x2 double-buffered,
      * dec/mask/out tiles x2 double-buffered (with sublane/lane padding),
      * weights counted x2 (auto-pipelining double-buffers even constant-index
        inputs),
      * f32 intermediates the compiler materializes inside the body
        (enc_proj + energy ~= 2 * S * TB * A_pad * 4 bytes).
    Prefers TB a multiple of 16 (clean bf16 sublane packing -> the in-kernel
    reshape is a no-op collapse) and grid >= 2 (v7x megacore + DMA/compute
    overlap), giving those up only when B forces it.
    """
    def footprint(tb):
        enc = 2 * S * _round_up(tb, 16) * _round_up(E2, 128) * 2          # bf16
        dec = 2 * _round_up(tb, 16) * _round_up(D, 128) * 2               # bf16
        msk = 2 * _round_up(tb, 8) * _round_up(S, 128) * 4                # i32
        out = 2 * _round_up(tb, 8) * _round_up(S, 128) * 4                # f32
        wts = 2 * (_round_up(D, 16) * A_pad * 2                           # wd bf16
                   + _round_up(E2, 16) * A_pad * 2                        # we bf16
                   + 2 * 8 * A_pad * 4)                                   # b, v f32
        interm = 2 * S * _round_up(tb, 8) * A_pad * 4                     # f32 temps
        return enc + dec + msk + out + wts + interm

    divisors = [d for d in range(1, B + 1) if B % d == 0]
    mult16 = [d for d in divisors if d % 16 == 0]
    cands = sorted(mult16 or divisors, reverse=True)                      # big first

    fitting = [d for d in cands if footprint(d) <= budget_bytes]
    if not fitting:
        return min(cands)                    # smallest possible tile; compiler copes
    split = [d for d in fitting if B // d >= 2]                           # grid >= 2
    return (split or fitting)[0]


def attention_forward(decoder_hidden, encoder_outputs, mask, WT, b, v, *, block_b=None):
    """Forward pass of the PyTorch `Attention` module.

    decoder_hidden : [B, D]            f32
    encoder_outputs: [S, B, 2*enc_hid] f32, PyTorch seq-first layout (used as-is)
    mask           : [B, S]            (0 = padding)
    WT             : [D + 2*enc_hid, A]  == attn_W.weight.T
    b              : [A] (or [1, A])     == attn_W.bias
    v              : [A] (or [1, A])     == attn_v.weight
    Returns softmax attention weights, [B, S] float32.
    """
    S, B, E2 = encoder_outputs.shape
    D = decoder_hidden.shape[1]
    A = WT.shape[1]

    # One-time weight prep: zero-pad A to a lane multiple (mathematically inert
    # because v is zero there).  In production do this once at parameter load.
    A_pad = pl.cdiv(A, 128) * 128
    WT_p = jnp.pad(WT, ((0, 0), (0, A_pad - A)))
    b_p = jnp.pad(jnp.reshape(b, (1, A)).astype(jnp.float32), ((0, 0), (0, A_pad - A)))
    v_p = jnp.pad(jnp.reshape(v, (1, A)).astype(jnp.float32), ((0, 0), (0, A_pad - A)))
    wd = WT_p[:D].astype(jnp.bfloat16)            # [D,  A_pad]
    we = WT_p[D:].astype(jnp.bfloat16)            # [E2, A_pad]

    # bf16 matmul inputs; accumulation stays f32 inside the kernel.  In a real
    # pipeline the encoder should emit bf16 directly so this cast is free.
    dec_bf = decoder_hidden.astype(jnp.bfloat16)
    enc_bf = encoder_outputs.astype(jnp.bfloat16)  # NOTE: no layout transpose here
    mask_i = mask.astype(jnp.int32)

    vmem_limit = _vmem_limit_bytes()
    if block_b is not None:
        TB = block_b
    else:
        TB = _pick_block_b(B, S, D, E2, A_pad,
                           budget_bytes=int(0.85 * vmem_limit))
    assert B % TB == 0, "batch must be divisible by the batch tile"
    grid = (B // TB,)

    return pl.pallas_call(
        attention_kernel,
        out_shape=jax.ShapeDtypeStruct((B, S), jnp.float32),
        grid=grid,
        in_specs=[
            pl.BlockSpec((TB, D), lambda i: (i, 0)),         # decoder hidden tile
            pl.BlockSpec((S, TB, E2), lambda i: (0, i, 0)),  # enc outputs, seq-major
            pl.BlockSpec((TB, S), lambda i: (i, 0)),         # mask tile
            pl.BlockSpec((D, A_pad), lambda i: (0, 0)),      # VMEM-resident weights
            pl.BlockSpec((E2, A_pad), lambda i: (0, 0)),
            pl.BlockSpec((1, A_pad), lambda i: (0, 0)),
            pl.BlockSpec((1, A_pad), lambda i: (0, 0)),
        ],
        out_specs=pl.BlockSpec((TB, S), lambda i: (i, 0)),
        compiler_params=pltpu.CompilerParams(
            dimension_semantics=("parallel",),      # shard batch axis across TCs (v7x)
            vmem_limit_bytes=vmem_limit),           # generation-aware scoped limit
    )(dec_bf, enc_bf, mask_i, wd, we, b_p, v_p)


if __name__ == "__main__":
    enc_hid_dim = 32
    dec_hid_dim = 32
    attn_dim = 64
    src_len = 8
    batch = 32                                  # small, but enough for a 2-step grid
    attn_in = 2 * enc_hid_dim + dec_hid_dim     # 96

    key = jax.random.PRNGKey(0)
    k_dec, k_enc, k_w, k_b, k_v = jax.random.split(key, 5)

    decoder_hidden = jax.random.normal(k_dec, (batch, dec_hid_dim), dtype=jnp.float32)
    encoder_outputs = jax.random.normal(
        k_enc, (src_len, batch, 2 * enc_hid_dim), dtype=jnp.float32)

    # Deterministic valid lengths in [1, src_len]; mask[b, s] = 1 iff s < length[b].
    lengths = 1 + (jnp.arange(batch, dtype=jnp.int32) % src_len)
    mask = (jax.lax.broadcasted_iota(jnp.int32, (batch, src_len), 1)
            < lengths[:, None]).astype(jnp.int32)

    # PyTorch nn.Linear-style uniform init (deterministic).
    bound_w = 1.0 / math.sqrt(attn_in)
    WT = jax.random.uniform(k_w, (attn_in, attn_dim),
                            minval=-bound_w, maxval=bound_w, dtype=jnp.float32)
    b = jax.random.uniform(k_b, (attn_dim,),
                           minval=-bound_w, maxval=bound_w, dtype=jnp.float32)
    bound_v = 1.0 / math.sqrt(attn_dim)
    v = jax.random.uniform(k_v, (attn_dim,),
                           minval=-bound_v, maxval=bound_v, dtype=jnp.float32)

    # No hard-coded block_b: the picker sizes the batch tile from the VMEM
    # budget (prefers grid >= 2, so these shapes still exercise the pipeline).
    out = attention_forward(decoder_hidden, encoder_outputs, mask, WT, b, v)
    out = jax.block_until_ready(out)

    # Pure-JAX reference, same math as the PyTorch forward.
    def reference(dec_f, enc_f, WT_f):
        enc_p = jnp.transpose(enc_f, (1, 0, 2))
        cat = jnp.concatenate(
            [jnp.broadcast_to(dec_f[:, None, :], (batch, src_len, dec_hid_dim)),
             enc_p], axis=2)
        energy = jnp.tanh(cat @ WT_f + b.reshape(1, 1, -1))
        att = jnp.sum(energy * v.reshape(1, 1, -1), axis=-1)
        att = jnp.where(mask == 0, -1.0e10, att)
        return jax.nn.softmax(att, axis=1)

    # Tight check: reference fed the same bf16-rounded matmul inputs the kernel uses.
    ref_bf16 = reference(decoder_hidden.astype(jnp.bfloat16).astype(jnp.float32),
                         encoder_outputs.astype(jnp.bfloat16).astype(jnp.float32),
                         WT.astype(jnp.bfloat16).astype(jnp.float32))
    # Looser check against the exact f32 PyTorch math.
    ref_f32 = reference(decoder_hidden, encoder_outputs, WT)

    assert out.shape == (batch, src_len)
    assert jnp.allclose(out, ref_bf16, atol=2e-3), "mismatch vs bf16-input reference"
    assert jnp.allclose(out, ref_f32, atol=2e-2), "drift vs f32 reference too large"

    print("KERNEL_OK")
</pallas_src>

<mosaic_0001>
module attributes {stable_mosaic.version = 11 : i64} {
  func.func @attention_kernel(%arg0: i32, %arg1: memref<16x32xbf16, #tpu.memory_space<vmem>>, %arg2: memref<8x16x64xbf16, #tpu.memory_space<vmem>>, %arg3: memref<16x8xi32, #tpu.memory_space<vmem>>, %arg4: memref<32x128xbf16, #tpu.memory_space<vmem>>, %arg5: memref<64x128xbf16, #tpu.memory_space<vmem>>, %arg6: memref<1x128xf32, #tpu.memory_space<vmem>>, %arg7: memref<1x128xf32, #tpu.memory_space<vmem>>, %arg8: memref<16x8xf32, #tpu.memory_space<vmem>>) attributes {dimension_semantics = [#tpu.dimension_semantics<parallel>], iteration_bounds = array<i64: 2>, scalar_prefetch = 0 : i64, scratch_operands = 0 : i64, tpu.core_type = #tpu.core_type<tc>, window_params = [{transform_indices = @transform_0, window_bounds = array<i64: 16, 32>}, {transform_indices = @transform_1, window_bounds = array<i64: 8, 16, 64>}, {transform_indices = @transform_2, window_bounds = array<i64: 16, 8>}, {pipeline_mode = #tpu.pipeline_mode<synchronous>, transform_indices = @transform_3, window_bounds = array<i64: 32, 128>}, {pipeline_mode = #tpu.pipeline_mode<synchronous>, transform_indices = @transform_4, window_bounds = array<i64: 64, 128>}, {pipeline_mode = #tpu.pipeline_mode<synchronous>, transform_indices = @transform_5, window_bounds = array<i64: 1, 128>}, {pipeline_mode = #tpu.pipeline_mode<synchronous>, transform_indices = @transform_6, window_bounds = array<i64: 1, 128>}, {transform_indices = @transform_7, window_bounds = array<i64: 16, 8>}]} {
    %c0 = arith.constant 0 : index
    %c0_0 = arith.constant 0 : index
    %c0_1 = arith.constant 0 : index
    %0 = vector.load %arg2[%c0, %c0_0, %c0_1] : memref<8x16x64xbf16, #tpu.memory_space<vmem>>, vector<8x16x64xbf16>
    %c0_2 = arith.constant 0 : index
    %c0_3 = arith.constant 0 : index
    %1 = vector.load %arg1[%c0_2, %c0_3] : memref<16x32xbf16, #tpu.memory_space<vmem>>, vector<16x32xbf16>
    %c0_4 = arith.constant 0 : index
    %c0_5 = arith.constant 0 : index
    %2 = vector.load %arg4[%c0_4, %c0_5] : memref<32x128xbf16, #tpu.memory_space<vmem>>, vector<32x128xbf16>
    %cst = arith.constant dense<0.000000e+00> : vector<16x128xf32>
    %3 = tpu.matmul %1, %2, %cst {dimension_numbers = #tpu.dot_dimension_numbers<[1], [0], [0], [1], [0, 0, 1, 1], [], []>} : vector<16x32xbf16>, vector<32x128xbf16>, vector<16x128xf32> -> vector<16x128xf32>
    %4 = vector.shape_cast %0 : vector<8x16x64xbf16> to vector<128x64xbf16>
    %c0_6 = arith.constant 0 : index
    %c0_7 = arith.constant 0 : index
    %5 = vector.load %arg5[%c0_6, %c0_7] : memref<64x128xbf16, #tpu.memory_space<vmem>>, vector<64x128xbf16>
    %cst_8 = arith.constant dense<0.000000e+00> : vector<128x128xf32>
    %6 = tpu.matmul %4, %5, %cst_8 {dimension_numbers = #tpu.dot_dimension_numbers<[1], [0], [0], [1], [0, 0, 1, 1], [], []>} : vector<128x64xbf16>, vector<64x128xbf16>, vector<128x128xf32> -> vector<128x128xf32>
    %7 = vector.shape_cast %6 : vector<128x128xf32> to vector<8x16x128xf32>
    %8 = vector.shape_cast %3 : vector<16x128xf32> to vector<1x16x128xf32>
    %9 = vector.broadcast %8 : vector<1x16x128xf32> to vector<8x16x128xf32>
    %10 = arith.addf %7, %9 : vector<8x16x128xf32>
    %c0_9 = arith.constant 0 : index
    %c0_10 = arith.constant 0 : index
    %11 = vector.load %arg6[%c0_9, %c0_10] : memref<1x128xf32, #tpu.memory_space<vmem>>, vector<1x128xf32>
    %12 = vector.shape_cast %11 : vector<1x128xf32> to vector<1x1x128xf32>
    %13 = vector.broadcast %12 : vector<1x1x128xf32> to vector<8x16x128xf32>
    %14 = arith.addf %10, %13 : vector<8x16x128xf32>
    %15 = math.tanh %14 : vector<8x16x128xf32>
    %c0_11 = arith.constant 0 : index
    %c0_12 = arith.constant 0 : index
    %16 = vector.load %arg7[%c0_11, %c0_12] : memref<1x128xf32, #tpu.memory_space<vmem>>, vector<1x128xf32>
    %17 = vector.shape_cast %16 : vector<1x128xf32> to vector<1x1x128xf32>
    %18 = vector.broadcast %17 : vector<1x1x128xf32> to vector<8x16x128xf32>
    %19 = arith.mulf %15, %18 : vector<8x16x128xf32>
    %cst_13 = arith.constant dense<0.000000e+00> : vector<8x16xf32>
    %20 = vector.multi_reduction <add>, %19, %cst_13 [2] : vector<8x16x128xf32> to vector<8x16xf32>
    %21 = tpu.transpose %20, [1, 0] : vector<8x16xf32> -> vector<16x8xf32>
    %c0_14 = arith.constant 0 : index
    %c0_15 = arith.constant 0 : index
    %22 = vector.load %arg3[%c0_14, %c0_15] : memref<16x8xi32, #tpu.memory_space<vmem>>, vector<16x8xi32>
    %c0_i32 = arith.constant 0 : i32
    %23 = vector.broadcast %c0_i32 : i32 to vector<16x8xi32>
    %24 = arith.cmpi eq, %22, %23 : vector<16x8xi32>
    %cst_16 = arith.constant -1.000000e+10 : f32
    %25 = vector.broadcast %cst_16 : f32 to vector<16x8xf32>
    %26 = arith.select %24, %25, %21 : vector<16x8xi1>, vector<16x8xf32>
    %cst_17 = arith.constant dense<0xFF800000> : vector<16xf32>
    %27 = vector.multi_reduction <maximumf>, %26, %cst_17 [1] : vector<16x8xf32> to vector<16xf32>
    %28 = vector.shape_cast %27 : vector<16xf32> to vector<16x1xf32>
    %29 = vector.broadcast %28 : vector<16x1xf32> to vector<16x8xf32>
    %30 = arith.subf %26, %29 : vector<16x8xf32>
    %31 = math.exp %30 : vector<16x8xf32>
    %cst_18 = arith.constant dense<0.000000e+00> : vector<16xf32>
    %32 = vector.multi_reduction <add>, %31, %cst_18 [1] : vector<16x8xf32> to vector<16xf32>
    %33 = vector.shape_cast %32 : vector<16xf32> to vector<16x1xf32>
    %34 = tpu.reciprocal %33 {approx = true} : vector<16x1xf32> -> vector<16x1xf32>
    %35 = vector.broadcast %34 : vector<16x1xf32> to vector<16x8xf32>
    %36 = arith.mulf %31, %35 : vector<16x8xf32>
    %c0_19 = arith.constant 0 : index
    %c0_20 = arith.constant 0 : index
    %37 = vector.load %arg8[%c0_19, %c0_20] : memref<16x8xf32, #tpu.memory_space<vmem>>, vector<16x8xf32>
    tpu.vector_store %arg8[%c0_19, %c0_20], %36 {strides = array<i32>} : memref<16x8xf32, #tpu.memory_space<vmem>>, vector<16x8xf32>,
    return
  }
  func.func @transform_0(%arg0: i32) -> (i32, i32) {
    %c0_i32 = arith.constant 0 : i32
    %c0_i32_0 = arith.constant 0 : i32
    return %arg0, %c0_i32 : i32, i32
  }
  func.func @transform_1(%arg0: i32) -> (i32, i32, i32) {
    %c0_i32 = arith.constant 0 : i32
    %c0_i32_0 = arith.constant 0 : i32
    %c0_i32_1 = arith.constant 0 : i32
    return %c0_i32, %arg0, %c0_i32_0 : i32, i32, i32
  }
  func.func @transform_2(%arg0: i32) -> (i32, i32) {
    %c0_i32 = arith.constant 0 : i32
    %c0_i32_0 = arith.constant 0 : i32
    return %arg0, %c0_i32 : i32, i32
  }
  func.func @transform_3(%arg0: i32) -> (i32, i32) {
    %c0_i32 = arith.constant 0 : i32
    %c0_i32_0 = arith.constant 0 : i32
    %c0_i32_1 = arith.constant 0 : i32
    return %c0_i32, %c0_i32_0 : i32, i32
  }
  func.func @transform_4(%arg0: i32) -> (i32, i32) {
    %c0_i32 = arith.constant 0 : i32
    %c0_i32_0 = arith.constant 0 : i32
    %c0_i32_1 = arith.constant 0 : i32
    return %c0_i32, %c0_i32_0 : i32, i32
  }
  func.func @transform_5(%arg0: i32) -> (i32, i32) {
    %c0_i32 = arith.constant 0 : i32
    %c0_i32_0 = arith.constant 0 : i32
    %c0_i32_1 = arith.constant 0 : i32
    return %c0_i32, %c0_i32_0 : i32, i32
  }
  func.func @transform_6(%arg0: i32) -> (i32, i32) {
    %c0_i32 = arith.constant 0 : i32
    %c0_i32_0 = arith.constant 0 : i32
    %c0_i32_1 = arith.constant 0 : i32
    return %c0_i32, %c0_i32_0 : i32, i32
  }
  func.func @transform_7(%arg0: i32) -> (i32, i32) {
    %c0_i32 = arith.constant 0 : i32
    %c0_i32_0 = arith.constant 0 : i32
    return %arg0, %c0_i32 : i32, i32
  }
}

</mosaic_0001>

<llo_original>
// kernel: tpu_custom_call.1
$region0: #{tpu_custom_call.1}
  #allocation0 [shape = 'u32[]', space=smem, size = 0x4, offset = 0x4, fixed_abs, tag = 'smem constant byte address 0x4 - core index']
  #allocation1 [shape = 'u32[144,128]{1,0:T(1,128)}', space=vmem, size = 0x12000, scoped, tag = 'internal scratch']
  #allocation6 [shape = 's32[]', space=sflag, size = 0x4, offset = 0, fixed_abs, tag = 'sflag constant byte address 0x0 - dummy sync flag']
  %s0 = inlined_call_operand.vmem [shape: bf16[32,32], index: 0, kind: input, shape index: {}]
  %s1 = inlined_call_operand.hbm [shape: bf16[8,32,64], index: 1, kind: input, shape index: {}]
  %s2 = inlined_call_operand.vmem [shape: s32[32,8], index: 2, kind: input, shape index: {}]
  %s3 = inlined_call_operand.hbm [shape: bf16[32,128], index: 3, kind: input, shape index: {}]
  %s4 = inlined_call_operand.vmem [shape: bf16[64,128], index: 4, kind: input, shape index: {}]
  %s5 = inlined_call_operand.vmem [shape: f32[1,128], index: 5, kind: input, shape index: {}]
  %s6 = inlined_call_operand.vmem [shape: f32[1,128], index: 6, kind: input, shape index: {}]
  %s7 = inlined_call_operand.vmem [shape: f32[32,8], index: 7, kind: output, shape index: {}]
  %s8 = sld [smem:[#allocation0]]
  $region69: #{tpu_custom_call.1} parent=0
    _
  %s10 = ssub.s32 1, %s8
  %s11 = scalar_select 0, %s10, %s8
  $region1: #{tpu_custom_call.1} parent=0
    #allocation2 [shape = 'u8[65536]{0}', space=vmem, size = 0x10000, scoped, tag = 'input window, operand 1']
    #allocation3 [shape = 's32[2]{0}', space=sflag, size = 0x8, scoped, tag = 'scoped memory for tpu_custom_call.1']
    #allocation4 [shape = 'u8[8192]{0}', space=vmem, size = 0x2000, scoped, tag = 'input window, operand 3, single buffered']
    #allocation5 [shape = 's32[1]{0}', space=sflag, size = 0x4, scoped, tag = 'scoped memory for tpu_custom_call.1']
    %12 = vsyncpa [#allocation3], 0
    %s13 = scalar_lea.sflag [#allocation3], 1
    %14 = vsyncpa %s13, 0
    %15 = vsyncpa [#allocation5], 0
    loop: start=0, step=1, limit=4
    $region2: #{tpu_custom_call.1} parent=1 // loop_pre_header
      _
    $region3: #{tpu_custom_call.1} parent=1 // loop_header
      %s17 = sphi 0, %s21
      %p18 = scmp.ge.s32.totalorder %s17, 4
      %s27 = sphi 0, %s29
      %s30 = sphi 0, %s27
      %s31 = sphi 0, %s30
      %s47 = sphi 0, %s31
      %s53 = sphi 0, %s55
      %s56 = sphi 0, %s53
      %s57 = sphi 0, %s56
      %s73 = sphi 0, %s57
      %s79 = sphi 0, %s81
      %s82 = sphi 0, %s79
      %s83 = sphi 0, %s82
      %s99 = sphi 0, %s83
      %s103 = sphi 0, %s103
      %s105 = sphi 0, %s103
      %s106 = sphi 0, %s105
      %s120 = sphi 0, %s106
      %s124 = sphi 0, %s124
      %s126 = sphi 0, %s124
      %s127 = sphi 0, %s126
      %s141 = sphi 0, %s127
      %s145 = sphi 0, %s145
      %s147 = sphi 0, %s145
      %s148 = sphi 0, %s147
      %s162 = sphi 0, %s148
      %s166 = sphi 0, %s166
      %s168 = sphi 0, %s166
      %s169 = sphi 0, %s168
      %s183 = sphi 0, %s169
      %s189 = sphi 0, %s191
      %s192 = sphi 0, %s189
      %s193 = sphi 0, %s192
      %s209 = sphi 0, %s193
    $region4: #{tpu_custom_call.1} parent=1 // loop_header_branch
      %20 = sbr.rel (%p18) target = $region8
    $region5: #{tpu_custom_call.1} parent=1 // loop_body
      %s22 = ssub.s32 %s17, 1
      %s23 = ssub.s32 %s17, 2
      %s24 = sadd.s32 %s17, 1
      %s25 = ssub.s32 %s17, %s24
      %p26 = scmp.eq.s32.totalorder %s25, 0
      %s28 = sadd.s32 %s27, 1
      %s29 = scalar_select %p26, %s27, %s28
      %p32 = pneg %p26
      %p33 = scmp.eq.s32.totalorder %s17, 1
      %p34 = por %p32, %p33
      %p35 = scmp.ne.s32.totalorder %s27, %s30
      %p36 = scmp.eq.s32.totalorder %s17, 0
      %p37 = por %p35, %p36
      %p38 = scmp.ne.s32.totalorder %s27, %s30
      %p39 = scmp.eq.s32.totalorder %s22, 1
      %p40 = por %p38, %p39
      %p41 = scmp.ne.s32.totalorder %s30, %s31
      %p42 = scmp.eq.s32.totalorder %s22, 0
      %p43 = por %p41, %p42
      %p44 = scmp.ne.s32.totalorder %s30, %s31
      %p45 = scmp.eq.s32.totalorder %s23, 1
      %p46 = por %p44, %p45
      %p48 = scmp.ne.s32.totalorder %s31, %s47
      %p49 = scmp.eq.s32.totalorder %s23, 0
      %p50 = por %p48, %p49
      %s51 = ssub.s32 %s17, %s24
      %p52 = scmp.eq.s32.totalorder %s51, 0
      %s54 = sadd.s32 %s53, 1
      %s55 = scalar_select %p52, %s53, %s54
      %p58 = pneg %p52
      %p59 = scmp.eq.s32.totalorder %s17, 1
      %p60 = por %p58, %p59
      %p61 = scmp.ne.s32.totalorder %s53, %s56
      %p62 = scmp.eq.s32.totalorder %s17, 0
      %p63 = por %p61, %p62
      %p64 = scmp.ne.s32.totalorder %s53, %s56
      %p65 = scmp.eq.s32.totalorder %s22, 1
      %p66 = por %p64, %p65
      %p67 = scmp.ne.s32.totalorder %s56, %s57
      %p68 = scmp.eq.s32.totalorder %s22, 0
      %p69 = por %p67, %p68
      %p70 = scmp.ne.s32.totalorder %s56, %s57
      %p71 = scmp.eq.s32.totalorder %s23, 1
      %p72 = por %p70, %p71
      %p74 = scmp.ne.s32.totalorder %s57, %s73
      %p75 = scmp.eq.s32.totalorder %s23, 0
      %p76 = por %p74, %p75
      %s77 = ssub.s32 %s17, %s24
      %p78 = scmp.eq.s32.totalorder %s77, 0
      %s80 = sadd.s32 %s79, 1
      %s81 = scalar_select %p78, %s79, %s80
      %p84 = pneg %p78
      %p85 = scmp.eq.s32.totalorder %s17, 1
      %p86 = por %p84, %p85
      %p87 = scmp.ne.s32.totalorder %s79, %s82
      %p88 = scmp.eq.s32.totalorder %s17, 0
      %p89 = por %p87, %p88
      %p90 = scmp.ne.s32.totalorder %s79, %s82
      %p91 = scmp.eq.s32.totalorder %s22, 1
      %p92 = por %p90, %p91
      %p93 = scmp.ne.s32.totalorder %s82, %s83
      %p94 = scmp.eq.s32.totalorder %s22, 0
      %p95 = por %p93, %p94
      %p96 = scmp.ne.s32.totalorder %s82, %s83
      %p97 = scmp.eq.s32.totalorder %s23, 1
      %p98 = por %p96, %p97
      %p100 = scmp.ne.s32.totalorder %s83, %s99
      %p101 = scmp.eq.s32.totalorder %s23, 0
      %p102 = por %p100, %p101
      %s104 = sadd.s32 %s103, 1
      %p107 = scmp.eq.s32.totalorder %s17, 1
      %p108 = scmp.ne.s32.totalorder %s103, %s105
      %p109 = scmp.eq.s32.totalorder %s17, 0
      %p110 = por %p108, %p109
      %p111 = scmp.ne.s32.totalorder %s103, %s105
      %p112 = scmp.eq.s32.totalorder %s22, 1
      %p113 = por %p111, %p112
      %p114 = scmp.ne.s32.totalorder %s105, %s106
      %p115 = scmp.eq.s32.totalorder %s22, 0
      %p116 = por %p114, %p115
      %p117 = scmp.ne.s32.totalorder %s105, %s106
      %p118 = scmp.eq.s32.totalorder %s23, 1
      %p119 = por %p117, %p118
      %p121 = scmp.ne.s32.totalorder %s106, %s120
      %p122 = scmp.eq.s32.totalorder %s23, 0
      %p123 = por %p121, %p122
      %s125 = sadd.s32 %s124, 1
      %p128 = scmp.eq.s32.totalorder %s17, 1
      %p129 = scmp.ne.s32.totalorder %s124, %s126
      %p130 = scmp.eq.s32.totalorder %s17, 0
      %p131 = por %p129, %p130
      %p132 = scmp.ne.s32.totalorder %s124, %s126
      %p133 = scmp.eq.s32.totalorder %s22, 1
      %p134 = por %p132, %p133
      %p135 = scmp.ne.s32.totalorder %s126, %s127
      %p136 = scmp.eq.s32.totalorder %s22, 0
      %p137 = por %p135, %p136
      %p138 = scmp.ne.s32.totalorder %s126, %s127
      %p139 = scmp.eq.s32.totalorder %s23, 1
      %p140 = por %p138, %p139
      %p142 = scmp.ne.s32.totalorder %s127, %s141
      %p143 = scmp.eq.s32.totalorder %s23, 0
      %p144 = por %p142, %p143
      %s146 = sadd.s32 %s145, 1
      %p149 = scmp.eq.s32.totalorder %s17, 1
      %p150 = scmp.ne.s32.totalorder %s145, %s147
      %p151 = scmp.eq.s32.totalorder %s17, 0
      %p152 = por %p150, %p151
      %p153 = scmp.ne.s32.totalorder %s145, %s147
      %p154 = scmp.eq.s32.totalorder %s22, 1
      %p155 = por %p153, %p154
      %p156 = scmp.ne.s32.totalorder %s147, %s148
      %p157 = scmp.eq.s32.totalorder %s22, 0
      %p158 = por %p156, %p157
      %p159 = scmp.ne.s32.totalorder %s147, %s148
      %p160 = scmp.eq.s32.totalorder %s23, 1
      %p161 = por %p159, %p160
      %p163 = scmp.ne.s32.totalorder %s148, %s162
      %p164 = scmp.eq.s32.totalorder %s23, 0
      %p165 = por %p163, %p164
      %s167 = sadd.s32 %s166, 1
      %p170 = scmp.eq.s32.totalorder %s17, 1
      %p171 = scmp.ne.s32.totalorder %s166, %s168
      %p172 = scmp.eq.s32.totalorder %s17, 0
      %p173 = por %p171, %p172
      %p174 = scmp.ne.s32.totalorder %s166, %s168
      %p175 = scmp.eq.s32.totalorder %s22, 1
      %p176 = por %p174, %p175
      %p177 = scmp.ne.s32.totalorder %s168, %s169
      %p178 = scmp.eq.s32.totalorder %s22, 0
      %p179 = por %p177, %p178
      %p180 = scmp.ne.s32.totalorder %s168, %s169
      %p181 = scmp.eq.s32.totalorder %s23, 1
      %p182 = por %p180, %p181
      %p184 = scmp.ne.s32.totalorder %s169, %s183
      %p185 = scmp.eq.s32.totalorder %s23, 0
      %p186 = por %p184, %p185
      %s187 = ssub.s32 %s17, %s24
      %p188 = scmp.eq.s32.totalorder %s187, 0
      %s190 = sadd.s32 %s189, 1
      %s191 = scalar_select %p188, %s189, %s190
      %p194 = pneg %p188
      %p195 = scmp.eq.s32.totalorder %s17, 1
      %p196 = por %p194, %p195
      %p197 = scmp.ne.s32.totalorder %s189, %s192
      %p198 = scmp.eq.s32.totalorder %s17, 0
      %p199 = por %p197, %p198
      %p200 = scmp.ne.s32.totalorder %s189, %s192
      %p201 = scmp.eq.s32.totalorder %s22, 1
      %p202 = por %p200, %p201
      %p203 = scmp.ne.s32.totalorder %s192, %s193
      %p204 = scmp.eq.s32.totalorder %s22, 0
      %p205 = por %p203, %p204
      %p206 = scmp.ne.s32.totalorder %s192, %s193
      %p207 = scmp.eq.s32.totalorder %s23, 1
      %p208 = por %p206, %p207
      %p210 = scmp.ne.s32.totalorder %s193, %s209
      %p211 = scmp.eq.s32.totalorder %s23, 0
      %p212 = por %p210, %p211
      %p213 = scmp.le.s32.totalorder 1, %s17
      %p214 = scmp.lt.s32.totalorder %s17, 3
      %p215 = pnand %p213, %p214
      %p216 = pneg %p215
      // Predicated region
      $region9: #{tpu_custom_call.1} parent=5 // pred_check
        _
      $region10: #{tpu_custom_call.1} parent=5 // pred_check_branch
        %218 = sbr.rel (%p215) target = $region12
      $region11: #{tpu_custom_call.1} parent=5 // pred_region
        %s219 = ssub.s32 %s17, 1
        // Predicated region
        $region13: #{tpu_custom_call.1} parent=11 // pred_check
          %p220 = pneg %p116
        $region14: #{tpu_custom_call.1} parent=11 // pred_check_branch
          %222 = sbr.rel (%p220) target = $region16
        $region15: #{tpu_custom_call.1} parent=11 // pred_region
          %s224 = ssub.s32 256, 256
          %225 = vsyncadd [#allocation5], %s224
          %s226 = sshll.u32 [#allocation4], 4
          %s227 = int_to_ptr.vmem [resolvable:$true] %s226
          %232 = dma.hbm_to_vmem [thread:$0]  %s3, 256, %s227, [#allocation5], 64, 64, 4
        $region16: #{tpu_custom_call.1} parent=11 // pred_fallthru
          _
        // Predicated region
        $region17: #{tpu_custom_call.1} parent=11 // pred_check
          %p233 = pneg %p137
        $region18: #{tpu_custom_call.1} parent=11 // pred_check_branch
          %235 = sbr.rel (%p233) target = $region20
        $region19: #{tpu_custom_call.1} parent=11 // pred_region
          _
        $region20: #{tpu_custom_call.1} parent=11 // pred_fallthru
          _
        // Predicated region
        $region21: #{tpu_custom_call.1} parent=11 // pred_check
          %p236 = pneg %p158
        $region22: #{tpu_custom_call.1} parent=11 // pred_check_branch
          %238 = sbr.rel (%p236) target = $region24
        $region23: #{tpu_custom_call.1} parent=11 // pred_region
          _
        $region24: #{tpu_custom_call.1} parent=11 // pred_fallthru
          _
        // Predicated region
        $region25: #{tpu_custom_call.1} parent=11 // pred_check
          %p239 = pneg %p179
        $region26: #{tpu_custom_call.1} parent=11 // pred_check_branch
          %241 = sbr.rel (%p239) target = $region28
        $region27: #{tpu_custom_call.1} parent=11 // pred_region
          _
        $region28: #{tpu_custom_call.1} parent=11 // pred_fallthru
          _
      $region12: #{tpu_custom_call.1} parent=5 // pred_fallthru
        _
      %p242 = scmp.lt.s32.totalorder %s17, 2
      // Predicated region
      $region29: #{tpu_custom_call.1} parent=5 // pred_check
        %p243 = pneg %p242
      $region30: #{tpu_custom_call.1} parent=5 // pred_check_branch
        %245 = sbr.rel (%p243) target = $region32
      $region31: #{tpu_custom_call.1} parent=5 // pred_region
        // Predicated region
        $region33: #{tpu_custom_call.1} parent=31 // pred_check
          %p246 = pneg %p37
        $region34: #{tpu_custom_call.1} parent=31 // pred_check_branch
          %248 = sbr.rel (%p246) target = $region36
        $region35: #{tpu_custom_call.1} parent=31 // pred_region
          %s249 = smul.u32 2, %s17
          %p250 = scmp.lt.s32.totalorder %s249, 3
          %s251 = scalar_select %p250, %s249, 3
          %s252 = smul.addr %s251, 4
          %s253 = scalar_lea.vmem %s0, %s252
          %s254 = smul.u32 2, %s17
        $region36: #{tpu_custom_call.1} parent=31 // pred_fallthru
          _
        // Predicated region
        $region37: #{tpu_custom_call.1} parent=31 // pred_check
          %p255 = pneg %p63
        $region38: #{tpu_custom_call.1} parent=31 // pred_check_branch
          %257 = sbr.rel (%p255) target = $region40
        $region39: #{tpu_custom_call.1} parent=31 // pred_region
          #allocation7 [shape = 'u32[6]{0}', space=smem, size = 0x18, scoped, tag = 'DMA stride descriptor']
          %s258 = sand.u32 %s53, 1
          %s259 = scalar_lea.sflag [#allocation3], %s258
          %s260 = sand.u32 %s53, 1
          %s261 = smul.addr %s260, 64
          %s262 = scalar_lea.vmem [#allocation2], %s261
          %s263 = smul.u32 2, %s17
          %s265 = ssub.s32 1024, 1024
          %266 = vsyncadd %s259, %s265
          %s267 = smul.addr %s263, 64
          %s268 = scalar_lea.hbm %s1, %s267
          %s270 = sshll.u32 1, 14
          %s271 = sxor.u32 4294967295, %s270
          %s273 = sld [smem:[#allocation0]]
          %s274 = sadd.s32 2, %s273
          %s276 = sshll.u32 7, 26
          %s277 = sxor.u32 4294967295, %s276
          %s278 = sand.u32 0, %s277
          %s279 = sshll.u32 %s274, 26
          %s280 = sor.u32 %s278, %s279
          %s281 = sshll.u32 %s262, 4
          %s282 = int_to_ptr.vmem [resolvable:$true] %s281
          %288 = sst [smem:[#allocation7]] 256
          %s289 = scalar_lea.smem [#allocation7], 1
          %290 = sst [smem:[%s289]] 128
          %s291 = scalar_lea.smem [#allocation7], 2
          %292 = sst [smem:[%s291]] 2
          %s293 = scalar_lea.smem [#allocation7], 3
          %294 = sst [smem:[%s293]] 64
          %s295 = scalar_lea.smem [#allocation7], 4
          %296 = sst [smem:[%s295]] 64
          %s297 = scalar_lea.smem [#allocation7], 5
          %298 = sst [smem:[%s297]] 4
          %300 = dma.general %s268, 1024, %s282, %s259, [#allocation6], [#allocation7], %s280, 0
        $region40: #{tpu_custom_call.1} parent=31 // pred_fallthru
          _
        // Predicated region
        $region41: #{tpu_custom_call.1} parent=31 // pred_check
          %p301 = pneg %p89
        $region42: #{tpu_custom_call.1} parent=31 // pred_check_branch
          %303 = sbr.rel (%p301) target = $region44
        $region43: #{tpu_custom_call.1} parent=31 // pred_region
          %s304 = smul.u32 2, %s17
          %p305 = scmp.lt.s32.totalorder %s304, 3
          %s306 = scalar_select %p305, %s304, 3
          %s307 = smul.addr %s306, 8
          %s308 = scalar_lea.vmem %s2, %s307
          %s309 = smul.u32 2, %s17
        $region44: #{tpu_custom_call.1} parent=31 // pred_fallthru
          _
      $region32: #{tpu_custom_call.1} parent=5 // pred_fallthru
        _
      %p310 = scmp.le.s32.totalorder 1, %s17
      %p311 = scmp.lt.s32.totalorder %s17, 3
      %p312 = pnand %p310, %p311
      %p313 = pneg %p312
      // Predicated region
      $region45: #{tpu_custom_call.1} parent=5 // pred_check
        _
      $region46: #{tpu_custom_call.1} parent=5 // pred_check_branch
        %315 = sbr.rel (%p312) target = $region48
      $region47: #{tpu_custom_call.1} parent=5 // pred_region
        %s316 = ssub.s32 %s17, 1
        %s317 = sand.u32 %s56, 1
        %s318 = scalar_lea.sflag [#allocation3], %s317
        %s319 = sand.u32 %s56, 1
        %s320 = smul.addr %s319, 64
        %s321 = scalar_lea.vmem [#allocation2], %s320
        // Predicated region
        $region49: #{tpu_custom_call.1} parent=47 // pred_check
          %p322 = pneg %p69
        $region50: #{tpu_custom_call.1} parent=47 // pred_check_branch
          %324 = sbr.rel (%p322) target = $region52
        $region51: #{tpu_custom_call.1} parent=47 // pred_region
          %325 = dma.done %s318, 1024
        $region52: #{tpu_custom_call.1} parent=47 // pred_fallthru
          _
        // Predicated region
        $region53: #{tpu_custom_call.1} parent=47 // pred_check
          %p326 = pneg %p116
        $region54: #{tpu_custom_call.1} parent=47 // pred_check_branch
          %328 = sbr.rel (%p326) target = $region56
        $region55: #{tpu_custom_call.1} parent=47 // pred_region
          %329 = dma.done [#allocation5], 256
        $region56: #{tpu_custom_call.1} parent=47 // pred_fallthru
          _
        %s330 = smul.u32 2, %s22
        %p331 = scmp.lt.s32.totalorder %s330, 3
        %s332 = scalar_select %p331, %s330, 3
        %s333 = smul.addr %s332, 4
        %s334 = scalar_lea.vmem %s0, %s333
        %p335 = pneg %p43
        %p336 = pneg %p40
        %s337 = sand.u32 %s56, 1
        %s338 = scalar_lea.sflag [#allocation3], %s337
        %s339 = sand.u32 %s56, 1
        %s340 = smul.addr %s339, 64
        %s341 = scalar_lea.vmem [#allocation2], %s340
        %p342 = pneg %p69
        %p343 = pneg %p66
        %s344 = smul.u32 2, %s22
        %p345 = scmp.lt.s32.totalorder %s344, 3
        %s346 = scalar_select %p345, %s344, 3
        %s347 = smul.addr %s346, 8
        %s348 = scalar_lea.vmem %s2, %s347
        %p349 = pneg %p95
        %p350 = pneg %p92
        %p351 = pneg %p116
        %p352 = pneg %p113
        %p353 = pneg %p137
        %p354 = pneg %p134
        %p355 = pneg %p158
        %p356 = pneg %p155
        %p357 = pneg %p179
        %p358 = pneg %p176
        %p359 = pneg %p205
        %p360 = pneg %p202
        %s361 = smul.u32 2, %s22
        %p362 = scmp.lt.s32.totalorder %s361, 3
        %s363 = scalar_select %p362, %s361, 3
        %s364 = smul.addr %s363, 8
        %s365 = scalar_lea.vmem %s7, %s364
        %s366 = smul.u32 2, %s22
        %p367 = scmp.lt.s32.totalorder %s366, 3
        %s368 = scalar_select %p367, %s366, 3
        %s369 = smul.addr %s368, 4
        %s370 = scalar_lea.vmem %s0, %s369
        %s371 = smul.u32 2, %s22
        %s372 = smul.u32 2, %s22
        %s373 = smul.u32 2, %s22
        %p374 = scmp.lt.s32.totalorder %s373, 3
        %s375 = scalar_select %p374, %s373, 3
        %s376 = smul.addr %s375, 8
        %s377 = scalar_lea.vmem %s2, %s376
        %s378 = smul.u32 2, %s22
        %s379 = smul.u32 2, %s22
        %p380 = scmp.lt.s32.totalorder %s379, 3
        %s381 = scalar_select %p380, %s379, 3
        %s382 = smul.addr %s381, 8
        %s383 = scalar_lea.vmem %s7, %s382
        %s384 = smul.u32 2, %s22
        %v386 = vld [vmem:[%s321] sm:$0xf]
        %v387 = vld [vmem:[%s321 + $0x4] sm:$0xf]
        %v388 = vld [vmem:[%s321 + $0x8] sm:$0xf]
        %v389 = vld [vmem:[%s321 + $0xc] sm:$0xf]
        %v390 = vld [vmem:[%s321 + $0x10] sm:$0xf]
        %v391 = vld [vmem:[%s321 + $0x14] sm:$0xf]
        %v392 = vld [vmem:[%s321 + $0x18] sm:$0xf]
        %v393 = vld [vmem:[%s321 + $0x1c] sm:$0xf]
        %v394 = vld [vmem:[%s321 + $0x20] sm:$0xf]
        %v395 = vld [vmem:[%s321 + $0x24] sm:$0xf]
        %v396 = vld [vmem:[%s321 + $0x28] sm:$0xf]
        %v397 = vld [vmem:[%s321 + $0x2c] sm:$0xf]
        %v398 = vld [vmem:[%s321 + $0x30] sm:$0xf]
        %v399 = vld [vmem:[%s321 + $0x34] sm:$0xf]
        %v400 = vld [vmem:[%s321 + $0x38] sm:$0xf]
        %v401 = vld [vmem:[%s321 + $0x3c] sm:$0xf]
        %v402 = vld [vmem:[%s370] sm:$0xf]
        %v403 = vld [vmem:[%s370 + $0x4] sm:$0xf]
        %v404 = vld [vmem:[#allocation4] sm:$0xf]
        %v405 = vld [vmem:[#allocation4 + $0x4] sm:$0xf]
        %v406 = vld [vmem:[#allocation4 + $0x8] sm:$0xf]
        %v407 = vld [vmem:[#allocation4 + $0xc] sm:$0xf]
        %v410 = vunpack.c.l.b16 %v402
        %v411 = vunpack.c.l.b16 %v403
        %v412 = vpack.c.b16 %v411, %v410
        %v417 = vunpack.c.l.b16 %v404
        %v418 = vunpack.c.l.b16 %v405
        %v419 = vunpack.c.l.b16 %v406
        %v420 = vunpack.c.l.b16 %v407
        %v421 = vpack.c.b16 %v418, %v417
        %v422 = vpack.c.b16 %v420, %v419
        %vm425 = vcmask 261120
        %v427 = vsel %vm425, %v412, 0
        %429 = vmatprep.subr.bf16.mxu0 0
        %430 = vmatpush1.bf16.msra.mxu0 %v421
        %431 = vmatprep.subr.bf16.mxu0 0
        %432 = vmatpush1.bf16.msra.mxu0 %v422
        %433 = vmatprep.subr.bf16.mxu0 0
        %434 = vmatpush1.bf16.msra.mxu0 0
        %435 = vmatprep.subr.bf16.mxu0 0
        %436 = vmatpush1.bf16.msra.mxu0 0
        %437 = vmatprep.subr.bf16.mxu0 0
        %438 = vmatpush1.bf16.msra.mxu0 0
        %439 = vmatprep.subr.bf16.mxu0 0
        %440 = vmatpush1.bf16.msra.mxu0 0
        %441 = vmatprep.subr.bf16.mxu0 0
        %442 = vmatpush1.bf16.msra.mxu0 0
        %443 = vmatprep.subr.bf16.mxu0 0
        %444 = vmatpush1.bf16.msra.mxu0 0
        %445 = vmatprep.subr.bf16.mxu0 0
        %446 = vmatpush1.bf16.msra.mxu0 0
        %447 = vmatprep.subr.bf16.mxu0 0
        %448 = vmatpush1.bf16.msra.mxu0 0
        %449 = vmatprep.subr.bf16.mxu0 0
        %450 = vmatpush1.bf16.msra.mxu0 0
        %451 = vmatprep.subr.bf16.mxu0 0
        %452 = vmatpush1.bf16.msra.mxu0 0
        %453 = vmatprep.subr.bf16.mxu0 0
        %454 = vmatpush1.bf16.msra.mxu0 0
        %455 = vmatprep.subr.bf16.mxu0 0
        %456 = vmatpush1.bf16.msra.mxu0 0
        %457 = vmatprep.subr.bf16.mxu0 0
        %458 = vmatpush1.bf16.msra.mxu0 0
        %459 = vmatprep.subr.bf16.mxu0 0
        %460 = vmatpush1.bf16.msra.mxu0 0
        %461 = vmatprep.mubr.bf16.mxu0 0
        %462 = vmatmul.mubr.bf16.gmra.mrb[0].mxu0 %v427
        %v463 = vpop.f32.mrb[0].mxu0
        %v464 = vadd.f32 0.0, %v463
        %v465 = vpop.f32.mrb[0].mxu0
        %v466 = vpop.f32.mrb[0].mxu0
        %v467 = vadd.f32 0.0, %v466
        %v468 = vpop.f32.mrb[0].mxu0
        %469 = vdwg.mxu0
        %v470 = vld [vmem:[%s4] sm:$0xf]
        %v471 = vld [vmem:[%s4 + $0x4] sm:$0xf]
        %v472 = vld [vmem:[%s4 + $0x8] sm:$0xf]
        %v473 = vld [vmem:[%s4 + $0xc] sm:$0xf]
        %v474 = vld [vmem:[%s4 + $0x10] sm:$0xf]
        %v475 = vld [vmem:[%s4 + $0x14] sm:$0xf]
        %v476 = vld [vmem:[%s4 + $0x18] sm:$0xf]
        %v477 = vld [vmem:[%s4 + $0x1c] sm:$0xf]
        %v494 = vunpack.c.l.b16 %v386
        %v495 = vunpack.c.l.b16 %v387
        %v496 = vunpack.c.l.b16 %v388
        %v497 = vunpack.c.l.b16 %v389
        %v498 = vunpack.c.l.b16 %v390
        %v499 = vunpack.c.l.b16 %v391
        %v500 = vunpack.c.l.b16 %v392
        %v501 = vunpack.c.l.b16 %v393
        %v502 = vunpack.c.l.b16 %v394
        %v503 = vunpack.c.l.b16 %v395
        %v504 = vunpack.c.l.b16 %v396
        %v505 = vunpack.c.l.b16 %v397
        %v506 = vunpack.c.l.b16 %v398
        %v507 = vunpack.c.l.b16 %v399
        %v508 = vunpack.c.l.b16 %v400
        %v509 = vunpack.c.l.b16 %v401
        %v510 = vpack.c.b16 %v495, %v494
        %v511 = vpack.c.b16 %v497, %v496
        %v512 = vpack.c.b16 %v499, %v498
        %v513 = vpack.c.b16 %v501, %v500
        %v514 = vpack.c.b16 %v503, %v502
        %v515 = vpack.c.b16 %v505, %v504
        %v516 = vpack.c.b16 %v507, %v506
        %v517 = vpack.c.b16 %v509, %v508
        %v526 = vunpack.c.l.b16 %v470
        %v527 = vunpack.c.l.b16 %v471
        %v528 = vunpack.c.l.b16 %v472
        %v529 = vunpack.c.l.b16 %v473
        %v530 = vunpack.c.l.b16 %v474
        %v531 = vunpack.c.l.b16 %v475
        %v532 = vunpack.c.l.b16 %v476
        %v533 = vunpack.c.l.b16 %v477
        %v534 = vpack.c.b16 %v527, %v526
        %v535 = vpack.c.b16 %v529, %v528
        %v536 = vpack.c.b16 %v531, %v530
        %v537 = vpack.c.b16 %v533, %v532
        %vm542 = vcmask 523264
        %v544 = vsel %vm542, %v510, 0
        %v547 = vsel %vm542, %v511, 0
        %v550 = vsel %vm542, %v512, 0
        %v553 = vsel %vm542, %v513, 0
        %v556 = vsel %vm542, %v514, 0
        %v559 = vsel %vm542, %v515, 0
        %v562 = vsel %vm542, %v516, 0
        %v565 = vsel %vm542, %v517, 0
        %567 = vmatprep.subr.bf16.mxu0 0
        %568 = vmatpush1.bf16.msra.mxu0 %v534
        %569 = vmatprep.subr.bf16.mxu0 0
        %570 = vmatpush1.bf16.msra.mxu0 %v535
        %571 = vmatprep.subr.bf16.mxu0 0
        %572 = vmatpush1.bf16.msra.mxu0 %v536
        %573 = vmatprep.subr.bf16.mxu0 0
        %574 = vmatpush1.bf16.msra.mxu0 %v537
        %575 = vmatprep.subr.bf16.mxu0 0
        %576 = vmatpush1.bf16.msra.mxu0 0
        %577 = vmatprep.subr.bf16.mxu0 0
        %578 = vmatpush1.bf16.msra.mxu0 0
        %579 = vmatprep.subr.bf16.mxu0 0
        %580 = vmatpush1.bf16.msra.mxu0 0
        %581 = vmatprep.subr.bf16.mxu0 0
        %582 = vmatpush1.bf16.msra.mxu0 0
        %583 = vmatprep.subr.bf16.mxu0 0
        %584 = vmatpush1.bf16.msra.mxu0 0
        %585 = vmatprep.subr.bf16.mxu0 0
        %586 = vmatpush1.bf16.msra.mxu0 0
        %587 = vmatprep.subr.bf16.mxu0 0
        %588 = vmatpush1.bf16.msra.mxu0 0
        %589 = vmatprep.subr.bf16.mxu0 0
        %590 = vmatpush1.bf16.msra.mxu0 0
        %591 = vmatprep.subr.bf16.mxu0 0
        %592 = vmatpush1.bf16.msra.mxu0 0
        %593 = vmatprep.subr.bf16.mxu0 0
        %594 = vmatpush1.bf16.msra.mxu0 0
        %595 = vmatprep.subr.bf16.mxu0 0
        %596 = vmatpush1.bf16.msra.mxu0 0
        %597 = vmatprep.subr.bf16.mxu0 0
        %598 = vmatpush1.bf16.msra.mxu0 0
        %599 = vmatprep.mubr.bf16.mxu0 0
        %600 = vmatmul.mubr.bf16.gmra.mrb[0].mxu0 %v544
        %v601 = vpop.f32.mrb[0].mxu0
        %v602 = vadd.f32 0.0, %v601
        %v603 = vpop.f32.mrb[0].mxu0
        %v604 = vpop.f32.mrb[0].mxu0
        %v605 = vadd.f32 0.0, %v604
        %v606 = vpop.f32.mrb[0].mxu0
        %607 = vmatprep.mubr.bf16.mxu0 0
        %608 = vmatmul.mubr.bf16.gmra.mrb[0].mxu0 %v547
        %v609 = vpop.f32.mrb[0].mxu0
        %v610 = vadd.f32 0.0, %v609
        %v611 = vpop.f32.mrb[0].mxu0
        %v612 = vpop.f32.mrb[0].mxu0
        %v613 = vadd.f32 0.0, %v612
        %v614 = vpop.f32.mrb[0].mxu0
        %615 = vmatprep.mubr.bf16.mxu0 0
        %616 = vmatmul.mubr.bf16.gmra.mrb[0].mxu0 %v550
        %v617 = vpop.f32.mrb[0].mxu0
        %v618 = vadd.f32 0.0, %v617
        %v619 = vpop.f32.mrb[0].mxu0
        %v620 = vpop.f32.mrb[0].mxu0
        %v621 = vadd.f32 0.0, %v620
        %v622 = vpop.f32.mrb[0].mxu0
        %623 = vmatprep.mubr.bf16.mxu0 0
        %624 = vmatmul.mubr.bf16.gmra.mrb[0].mxu0 %v553
        %v625 = vpop.f32.mrb[0].mxu0
        %v626 = vadd.f32 0.0, %v625
        %v627 = vpop.f32.mrb[0].mxu0
        %v628 = vpop.f32.mrb[0].mxu0
        %v629 = vadd.f32 0.0, %v628
        %v630 = vpop.f32.mrb[0].mxu0
        %631 = vmatprep.mubr.bf16.mxu0 0
        %632 = vmatmul.mubr.bf16.gmra.mrb[0].mxu0 %v556
        %v633 = vpop.f32.mrb[0].mxu0
        %v634 = vadd.f32 0.0, %v633
        %v635 = vpop.f32.mrb[0].mxu0
        %v636 = vpop.f32.mrb[0].mxu0
        %v637 = vadd.f32 0.0, %v636
        %v638 = vpop.f32.mrb[0].mxu0
        %639 = vmatprep.mubr.bf16.mxu0 0
        %640 = vmatmul.mubr.bf16.gmra.mrb[0].mxu0 %v559
        %v641 = vpop.f32.mrb[0].mxu0
        %v642 = vadd.f32 0.0, %v641
        %v643 = vpop.f32.mrb[0].mxu0
        %v644 = vpop.f32.mrb[0].mxu0
        %v645 = vadd.f32 0.0, %v644
        %v646 = vpop.f32.mrb[0].mxu0
        %647 = vmatprep.mubr.bf16.mxu0 0
        %648 = vmatmul.mubr.bf16.gmra.mrb[0].mxu0 %v562
        %v649 = vpop.f32.mrb[0].mxu0
        %v650 = vadd.f32 0.0, %v649
        %v651 = vpop.f32.mrb[0].mxu0
        %v652 = vpop.f32.mrb[0].mxu0
        %v653 = vadd.f32 0.0, %v652
        %v654 = vpop.f32.mrb[0].mxu0
        %655 = vmatprep.mubr.bf16.mxu0 0
        %656 = vmatmul.mubr.bf16.gmra.mrb[0].mxu0 %v565
        %v657 = vpop.f32.mrb[0].mxu0
        %v658 = vadd.f32 0.0, %v657
        %v659 = vpop.f32.mrb[0].mxu0
        %v660 = vpop.f32.mrb[0].mxu0
        %v661 = vadd.f32 0.0, %v660
        %v662 = vpop.f32.mrb[0].mxu0
        %663 = vdwg.mxu0
        %v664 = vadd.f32 %v602, %v464
        %v665 = vadd.f32 %v605, %v467
        %v666 = vadd.f32 %v610, %v464
        %v667 = vadd.f32 %v613, %v467
        %v668 = vadd.f32 %v618, %v464
        %v669 = vadd.f32 %v621, %v467
        %v670 = vadd.f32 %v626, %v464
        %v671 = vadd.f32 %v629, %v467
        %v672 = vadd.f32 %v634, %v464
        %v673 = vadd.f32 %v637, %v467
        %v674 = vadd.f32 %v642, %v464
        %v675 = vadd.f32 %v645, %v467
        %v676 = vadd.f32 %v650, %v464
        %v677 = vadd.f32 %v653, %v467
        %v678 = vadd.f32 %v658, %v464
        %v679 = vadd.f32 %v661, %v467
        %v680 = vld [vmem:[%s5] sm:$0x1]
        %v682 = vlaneseq
        %v683 = vshrl.u32 %v682, 7
        %v684 = vsub.s32 0, %v683
        %v685 = vrot.slane %v680, %v684
        %v687 = vadd.f32 %v664, %v685
        %v688 = vadd.f32 %v665, %v685
        %v689 = vadd.f32 %v666, %v685
        %v690 = vadd.f32 %v667, %v685
        %v691 = vadd.f32 %v668, %v685
        %v692 = vadd.f32 %v669, %v685
        %v693 = vadd.f32 %v670, %v685
        %v694 = vadd.f32 %v671, %v685
        %v695 = vadd.f32 %v672, %v685
        %v696 = vadd.f32 %v673, %v685
        %v697 = vadd.f32 %v674, %v685
        %v698 = vadd.f32 %v675, %v685
        %v699 = vadd.f32 %v676, %v685
        %v700 = vadd.f32 %v677, %v685
        %v701 = vadd.f32 %v678, %v685
        %v702 = vadd.f32 %v679, %v685
        %v703 = vtanh.pop %v687
        %v704 = vtanh.pop %v688
        %v705 = vtanh.pop %v689
        %v706 = vtanh.pop %v690
        %v707 = vtanh.pop %v691
        %v708 = vtanh.pop %v692
        %v709 = vtanh.pop %v693
        %v710 = vtanh.pop %v694
        %v711 = vtanh.pop %v695
        %v712 = vtanh.pop %v696
        %v713 = vtanh.pop %v697
        %v714 = vtanh.pop %v698
        %v715 = vtanh.pop %v699
        %v716 = vtanh.pop %v700
        %v717 = vtanh.pop %v701
        %v718 = vtanh.pop %v702
        %v719 = vld [vmem:[%s6] sm:$0x1]
        %v721 = vlaneseq
        %v722 = vshrl.u32 %v721, 7
        %v723 = vsub.s32 0, %v722
        %v724 = vrot.slane %v719, %v723
        %v726 = vmul.f32 %v703, %v724
        %v727 = vmul.f32 %v704, %v724
        %v728 = vmul.f32 %v705, %v724
        %v729 = vmul.f32 %v706, %v724
        %v730 = vmul.f32 %v707, %v724
        %v731 = vmul.f32 %v708, %v724
        %v732 = vmul.f32 %v709, %v724
        %v733 = vmul.f32 %v710, %v724
        %v734 = vmul.f32 %v711, %v724
        %v735 = vmul.f32 %v712, %v724
        %v736 = vmul.f32 %v713, %v724
        %v737 = vmul.f32 %v714, %v724
        %v738 = vmul.f32 %v715, %v724
        %v739 = vmul.f32 %v716, %v724
        %v740 = vmul.f32 %v717, %v724
        %v741 = vmul.f32 %v718, %v724
        %742 = vadd.xlane.f32.xlu0 %v726
        %v743 = vpop.xlane.xlu0 %742
        %744 = vadd.xlane.f32.xlu0 %v727
        %v745 = vpop.xlane.xlu0 %744
        %746 = vadd.xlane.f32.xlu0 %v728
        %v747 = vpop.xlane.xlu0 %746
        %748 = vadd.xlane.f32.xlu0 %v729
        %v749 = vpop.xlane.xlu0 %748
        %750 = vadd.xlane.f32.xlu0 %v730
        %v751 = vpop.xlane.xlu0 %750
        %752 = vadd.xlane.f32.xlu0 %v731
        %v753 = vpop.xlane.xlu0 %752
        %754 = vadd.xlane.f32.xlu0 %v732
        %v755 = vpop.xlane.xlu0 %754
        %756 = vadd.xlane.f32.xlu0 %v733
        %v757 = vpop.xlane.xlu0 %756
        %758 = vadd.xlane.f32.xlu0 %v734
        %v759 = vpop.xlane.xlu0 %758
        %760 = vadd.xlane.f32.xlu0 %v735
        %v761 = vpop.xlane.xlu0 %760
        %762 = vadd.xlane.f32.xlu0 %v736
        %v763 = vpop.xlane.xlu0 %762
        %764 = vadd.xlane.f32.xlu0 %v737
        %v765 = vpop.xlane.xlu0 %764
        %766 = vadd.xlane.f32.xlu0 %v738
        %v767 = vpop.xlane.xlu0 %766
        %768 = vadd.xlane.f32.xlu0 %v739
        %v769 = vpop.xlane.xlu0 %768
        %770 = vadd.xlane.f32.xlu0 %v740
        %v771 = vpop.xlane.xlu0 %770
        %772 = vadd.xlane.f32.xlu0 %v741
        %v773 = vpop.xlane.xlu0 %772
        %v790 = vlaneseq
        %v791 = vand.u32 %v790, 127
        %v792 = vlaneseq
        %v793 = vshrl.u32 %v792, 7
        %v794 = vsub.s32 %v791, %v793
        %v795 = vrot.slane %v743, %v794
        %v796 = vadd.s32 %v791, 4294967288
        %v797 = vlaneseq
        %v798 = vshrl.u32 %v797, 7
        %v799 = vsub.s32 %v796, %v798
        %v800 = vrot.slane %v745, %v799
        %vm801 = vcmask 130112
        %v802 = vsel %vm801, %v800, %v795
        %v803 = vlaneseq
        %v804 = vshrl.u32 %v803, 7
        %v805 = vsub.s32 %v791, %v804
        %v806 = vrot.slane %v747, %v805
        %v807 = vlaneseq
        %v808 = vshrl.u32 %v807, 7
        %v809 = vsub.s32 %v796, %v808
        %v810 = vrot.slane %v749, %v809
        %v811 = vsel %vm801, %v810, %v806
        %v812 = vlaneseq
        %v813 = vshrl.u32 %v812, 7
        %v814 = vsub.s32 %v791, %v813
        %v815 = vrot.slane %v751, %v814
        %v816 = vlaneseq
        %v817 = vshrl.u32 %v816, 7
        %v818 = vsub.s32 %v796, %v817
        %v819 = vrot.slane %v753, %v818
        %v820 = vsel %vm801, %v819, %v815
        %v821 = vlaneseq
        %v822 = vshrl.u32 %v821, 7
        %v823 = vsub.s32 %v791, %v822
        %v824 = vrot.slane %v755, %v823
        %v825 = vlaneseq
        %v826 = vshrl.u32 %v825, 7
        %v827 = vsub.s32 %v796, %v826
        %v828 = vrot.slane %v757, %v827
        %v829 = vsel %vm801, %v828, %v824
        %v830 = vlaneseq
        %v831 = vshrl.u32 %v830, 7
        %v832 = vsub.s32 %v791, %v831
        %v833 = vrot.slane %v759, %v832
        %v834 = vlaneseq
        %v835 = vshrl.u32 %v834, 7
        %v836 = vsub.s32 %v796, %v835
        %v837 = vrot.slane %v761, %v836
        %v838 = vsel %vm801, %v837, %v833
        %v839 = vlaneseq
        %v840 = vshrl.u32 %v839, 7
        %v841 = vsub.s32 %v791, %v840
        %v842 = vrot.slane %v763, %v841
        %v843 = vlaneseq
        %v844 = vshrl.u32 %v843, 7
        %v845 = vsub.s32 %v796, %v844
        %v846 = vrot.slane %v765, %v845
        %v847 = vsel %vm801, %v846, %v842
        %v848 = vlaneseq
        %v849 = vshrl.u32 %v848, 7
        %v850 = vsub.s32 %v791, %v849
        %v851 = vrot.slane %v767, %v850
        %v852 = vlaneseq
        %v853 = vshrl.u32 %v852, 7
        %v854 = vsub.s32 %v796, %v853
        %v855 = vrot.slane %v769, %v854
        %v856 = vsel %vm801, %v855, %v851
        %v857 = vlaneseq
        %v858 = vshrl.u32 %v857, 7
        %v859 = vsub.s32 %v791, %v858
        %v860 = vrot.slane %v771, %v859
        %v861 = vlaneseq
        %v862 = vshrl.u32 %v861, 7
        %v863 = vsub.s32 %v796, %v862
        %v864 = vrot.slane %v773, %v863
        %v865 = vsel %vm801, %v864, %v860
        %vm866 = vcmask 1041409
        %v867 = vsel %vm866, %v811, %v802
        %vm868 = vcmask 1042434
        %v869 = vsel %vm868, %v820, %v867
        %vm870 = vcmask 1043459
        %v871 = vsel %vm870, %v829, %v869
        %vm872 = vcmask 1044484
        %v873 = vsel %vm872, %v838, %v871
        %vm874 = vcmask 1045509
        %v875 = vsel %vm874, %v847, %v873
        %vm876 = vcmask 1046534
        %v877 = vsel %vm876, %v856, %v875
        %vm878 = vcmask 1047559
        %v879 = vsel %vm878, %v865, %v877
        %881 = vxpose.xlu0.b32.start [1/16] %v879, 128
        %882 = vxpose.xlu0.b32.cont [2/16] 0.0, 128
        %883 = vxpose.xlu0.b32.cont [3/16] 0.0, 128
        %884 = vxpose.xlu0.b32.cont [4/16] 0.0, 128
        %885 = vxpose.xlu0.b32.cont [5/16] 0.0, 128
        %886 = vxpose.xlu0.b32.cont [6/16] 0.0, 128
        %887 = vxpose.xlu0.b32.cont [7/16] 0.0, 128
        %888 = vxpose.xlu0.b32.cont [8/16] 0.0, 128
        %889 = vxpose.xlu0.b32.cont [9/16] 0.0, 128
        %890 = vxpose.xlu0.b32.cont [10/16] 0.0, 128
        %891 = vxpose.xlu0.b32.cont [11/16] 0.0, 128
        %892 = vxpose.xlu0.b32.cont [12/16] 0.0, 128
        %893 = vxpose.xlu0.b32.cont [13/16] 0.0, 128
        %894 = vxpose.xlu0.b32.cont [14/16] 0.0, 128
        %895 = vxpose.xlu0.b32.cont [15/16] 0.0, 128
        %896 = vxpose.xlu0.b32.end [16/16] 0.0, 128
        %v897 = vpop.trf.xlu0
        %v898 = vpop.trf.xlu0
        %v899 = vpop.trf.xlu0
        %v900 = vpop.trf.xlu0
        %v901 = vpop.trf.xlu0
        %v902 = vpop.trf.xlu0
        %v903 = vpop.trf.xlu0
        %v904 = vpop.trf.xlu0
        %v905 = vpop.trf.xlu0
        %v906 = vpop.trf.xlu0
        %v907 = vpop.trf.xlu0
        %v908 = vpop.trf.xlu0
        %v909 = vpop.trf.xlu0
        %v910 = vpop.trf.xlu0
        %v911 = vpop.trf.xlu0
        %v912 = vpop.trf.xlu0
        %v913 = vld [vmem:[%s377] sm:$0xff]
        %v914 = vld [vmem:[%s377 + $0x8] sm:$0xff]
        %vm915 = vcmp.eq.s32.totalorder %v913, 0
        %vm916 = vcmp.eq.s32.totalorder %v914, 0
        %v917 = vsel %vm915, -1e+10, %v897
        %v918 = vsel %vm916, -1e+10, %v898
        %vm919 = vcmask 64512
        %v920 = vsel %vm919, %v917, -inf
        %921 = vmax.xlane.f32.xlu0 %v920
        %v922 = vpop.xlane.xlu0 %921
        %v923 = vsel %vm919, %v918, -inf
        %924 = vmax.xlane.f32.xlu0 %v923
        %v925 = vpop.xlane.xlu0 %924
        %v926 = vsub.f32 %v917, %v922
        %v927 = vsub.f32 %v918, %v925
        %v928 = vmul.f32 %v926, 1.442695
        %v929 = vpow.pop %v928
        %v930 = vmul.f32 %v927, 1.442695
        %v931 = vpow.pop %v930
        %v932 = vsel %vm919, %v929, 0.0
        %933 = vadd.xlane.f32.xlu0 %v932
        %v934 = vpop.xlane.xlu0 %933
        %v935 = vsel %vm919, %v931, 0.0
        %936 = vadd.xlane.f32.xlu0 %v935
        %v937 = vpop.xlane.xlu0 %936
        %v938 = vrcp.pop %v934
        %v939 = vrcp.pop %v937
        %v940 = vmul.f32 %v929, %v938
        %v941 = vmul.f32 %v931, %v939
        %942 = vst.msk [vmem:[%s383] sm:$0xff] %vm919, %v940
        %943 = vst.msk [vmem:[%s383 + $0x8] sm:$0xff] %vm919, %v941
        %s944 = smul.u32 2, %s22
        %p945 = scmp.lt.s32.totalorder %s944, 3
        %s946 = scalar_select %p945, %s944, 3
        %s947 = smul.addr %s946, 8
        %s948 = scalar_lea.vmem %s7, %s947
        // Predicated region
        $region57: #{tpu_custom_call.1} parent=47 // pred_check
          %p949 = pneg %p202
        $region58: #{tpu_custom_call.1} parent=47 // pred_check_branch
          %951 = sbr.rel (%p949) target = $region60
        $region59: #{tpu_custom_call.1} parent=47 // pred_region
          %s952 = smul.u32 2, %s22
        $region60: #{tpu_custom_call.1} parent=47 // pred_fallthru
          _
      $region48: #{tpu_custom_call.1} parent=5 // pred_fallthru
        _
      %p953 = scmp.le.s32.totalorder 2, %s17
      // Predicated region
      $region61: #{tpu_custom_call.1} parent=5 // pred_check
        %p954 = pneg %p953
      $region62: #{tpu_custom_call.1} parent=5 // pred_check_branch
        %956 = sbr.rel (%p954) target = $region64
      $region63: #{tpu_custom_call.1} parent=5 // pred_region
        %s957 = ssub.s32 %s17, 2
        // Predicated region
        $region65: #{tpu_custom_call.1} parent=63 // pred_check
          %p958 = pneg %p208
        $region66: #{tpu_custom_call.1} parent=63 // pred_check_branch
          %960 = sbr.rel (%p958) target = $region68
        $region67: #{tpu_custom_call.1} parent=63 // pred_region
          %s961 = smul.u32 2, %s23
          %p962 = scmp.lt.s32.totalorder %s961, 3
          %s963 = scalar_select %p962, %s961, 3
          %s964 = smul.addr %s963, 8
          %s965 = scalar_lea.vmem %s7, %s964
        $region68: #{tpu_custom_call.1} parent=63 // pred_fallthru
          _
      $region64: #{tpu_custom_call.1} parent=5 // pred_fallthru
        _
    $region6: #{tpu_custom_call.1} parent=1 // loop_footer
      %s21 = sadd.s32 1, %s17
    $region7: #{tpu_custom_call.1} parent=1 // loop_footer_branch
      %16 = sbr.rel target = $region3
    $region8: #{tpu_custom_call.1} parent=1 // loop_exit
      _
    %966 = vsyncpa [#allocation3], 1
    %s967 = scalar_lea.sflag [#allocation3], 1
    %968 = vsyncpa %s967, 1
    %969 = vsyncpa [#allocation5], 1

</llo_original>
